<compile_context>
chip_gen: v6e
topology: v6e:2x2x1
jax: 0.10.0
libtpu: 0.0.40
codegen_flags: <defaults>
</compile_context>

<pallas_src>
import functools

import jax
import jax.numpy as jnp
import numpy as np
from jax.experimental import pallas as pl
from jax.experimental.pallas import tpu as pltpu


def _round_up(x, m):
    return ((x + m - 1) // m) * m


def _vmem_capacity_bytes():
    """Per-generation VMEM capacity; conservative (v7x, 64 MiB) fallback."""
    try:
        return int(pltpu.get_tpu_info().vmem_capacity_bytes)
    except Exception:
        return 64 * 1024 * 1024


def _matmul_bias_kernel(a_ref, w_ref, b_ref, o_ref, *, precision):
    """One M-tile of the im2col matmul.

    a_ref : (TM, K)   im2col rows (K = KH*KW*C, un-padded in HBM)
    w_ref : (K,  OP)  pre-masked conv weights (O zero-padded to 128 mult)
    b_ref : (1,  OP)  bias (zero-padded, f32)
    o_ref : (TM, OP)  output tile (lane-dense)
    """
    acc = jnp.dot(a_ref[...], w_ref[...],
                  preferred_element_type=jnp.float32,
                  precision=precision)
    o_ref[...] = (acc + b_ref[...].astype(jnp.float32)).astype(o_ref.dtype)


def hexagon_conv2d(x, weight, mask, bias, *, stride=1, padding=0,
                   precision=None, compute_dtype=None, block_m=1024):
    """x: (N, C, H, W) NCHW; weight/mask: (O, C, KH, KW); bias: (O,).

    Returns (N, O, OH, OW), matching nn.Conv2d(x, weight*mask, bias).
    compute_dtype=jnp.bfloat16 casts the matmul operands (recommended for
    production on v6e/v7x); accumulation and output stay float32."""
    N, C, H, W = x.shape
    O, Cw, KH, KW = weight.shape
    assert Cw == C
    OH = (H + 2 * padding - KH) // stride + 1
    OW = (W + 2 * padding - KW) // stride + 1

    # Hexagon masking done once on the weights (no per-step mask DMA / VALU).
    wm = weight * mask                                      # (O, C, KH, KW)

    # --- boundary glue (XLA ops) ---------------------------------------
    # NCHW -> NHWC, zero pad, im2col into a 2-D slab. Negligible at these toy
    # shapes; see TODO(synk) above for the production in-kernel fusion.
    x_nhwc = jnp.transpose(x, (0, 2, 3, 1))
    xp = jnp.pad(x_nhwc,
                 ((0, 0), (padding, padding), (padding, padding), (0, 0)))

    cols = []
    for kh in range(KH):
        for kw in range(KW):
            cols.append(xp[:, kh:kh + stride * (OH - 1) + 1:stride,
                              kw:kw + stride * (OW - 1) + 1:stride, :])
    patches = jnp.concatenate(cols, axis=-1)                # (N, OH, OW, K)

    K = KH * KW * C
    M = N * OH * OW
    a = patches.reshape(M, K)                               # (M, K)  K-major taps
    w2 = jnp.transpose(wm, (2, 3, 1, 0)).reshape(K, O)      # (K, O)  matching order

    out_dtype = x.dtype
    if compute_dtype is not None:
        a = a.astype(compute_dtype)
        w2 = w2.astype(compute_dtype)
    in_itemsize = jnp.dtype(a.dtype).itemsize
    out_itemsize = jnp.dtype(out_dtype).itemsize

    # Lane-dense output channels only; K is intentionally NOT padded in HBM.
    OP = _round_up(O, 128)
    sub = 16 if in_itemsize == 2 else 8                     # sublane multiple

    # --- M-tile selection ------------------------------------------------
    # Want >= 4 grid steps (>= 2 per TensorCore on v7x) but no larger than
    # block_m, then shrink until double-buffered tiles fit the VMEM budget.
    min_steps = 4
    tm_for_steps = _round_up(max(pl.cdiv(M, min_steps), 1), sub)
    TM = max(sub, min(_round_up(block_m, sub), tm_for_steps))

    KV = _round_up(K, 128)                                  # VMEM lane padding

    def vmem_need(tm):
        a_buf = tm * KV * in_itemsize                       # A tile (lane-padded)
        o_buf = tm * OP * out_itemsize                      # O tile
        w_buf = _round_up(K, sub) * OP * in_itemsize        # resident weights
        b_buf = OP * 4                                      # resident bias (f32)
        return 2 * (a_buf + o_buf) + 2 * (w_buf + b_buf)    # double-buffered

    budget = min(int(0.6 * _vmem_capacity_bytes()), 48 * 1024 * 1024)
    while vmem_need(TM) > budget and TM > sub:
        TM = max(sub, _round_up(TM // 2, sub))

    MP = _round_up(M, TM)
    a_p = jnp.pad(a, ((0, MP - M), (0, 0)))                 # rows only, no K pad
    w_p = jnp.pad(w2, ((0, 0), (0, OP - O)))
    b_p = jnp.pad(bias.reshape(1, O), ((0, 0), (0, OP - O))).astype(jnp.float32)

    vmem_limit = int(min(max(4 * vmem_need(TM), 16 * 1024 * 1024),
                         48 * 1024 * 1024))

    cost = pl.CostEstimate(
        flops=2 * M * K * O,
        transcendentals=0,
        bytes_accessed=int(MP * K * in_itemsize            # A stream
                           + K * OP * in_itemsize          # weights
                           + OP * 4                        # bias
                           + MP * OP * out_itemsize))      # output

    kernel = functools.partial(_matmul_bias_kernel, precision=precision)

    out_p = pl.pallas_call(
        kernel,
        out_shape=jax.ShapeDtypeStruct((MP, OP), out_dtype),
        grid_spec=pltpu.PrefetchScalarGridSpec(
            num_scalar_prefetch=0,
            grid=(MP // TM,),
            in_specs=[
                pl.BlockSpec((TM, K), lambda i: (i, 0)),    # A: full K, no HBM pad
                pl.BlockSpec((K, OP), lambda i: (0, 0)),    # W: resident
                pl.BlockSpec((1, OP), lambda i: (0, 0)),    # bias: resident
            ],
            out_specs=pl.BlockSpec((TM, OP), lambda i: (i, 0)),
        ),
        compiler_params=pltpu.CompilerParams(
            dimension_semantics=("parallel",),
            vmem_limit_bytes=vmem_limit),
        cost_estimate=cost,
    )(a_p, w_p, b_p)

    # Padded rows of out_p hold bias (not zeros); always slice before use.
    out = out_p[:M, :O].reshape(N, OH, OW, O)
    return jnp.transpose(out, (0, 3, 1, 2))                 # back to NCHW


def make_hexagon_mask(out_channels, in_channels, kernel_size):
    """Same zeroed taps as the PyTorch module (negative indices wrap
    identically in numpy and torch fancy indexing)."""
    mask = np.ones((out_channels, in_channels, kernel_size, kernel_size),
                   dtype=np.float32)
    if kernel_size == 3:
        row = np.array([0, 2])
        col = np.array([2, 0])
    elif kernel_size == 5:
        row = np.array([0, 0, 1, -2, -1, -1])
        col = np.array([-2, -1, -1, 0, 0, 1])
    else:
        raise ValueError("HexagonConv2d only defines masks for k=3 or k=5")
    mask[:, :, row, col] = 0.0
    return jnp.asarray(mask)


if __name__ == "__main__":
    # Small shapes consistent with the module: batch=2, in_ch=4, out_ch=8, 16x16.
    N, C_IN, C_OUT, H, W, KS = 2, 4, 8, 16, 16, 3
    PAD = 1

    key = jax.random.PRNGKey(0)
    kx, kw_key, kb = jax.random.split(key, 3)

    x = jax.random.normal(kx, (N, C_IN, H, W), dtype=jnp.float32)
    weight = jax.random.normal(kw_key, (C_OUT, C_IN, KS, KS), dtype=jnp.float32) * 0.1
    bias = jax.random.normal(kb, (C_OUT,), dtype=jnp.float32) * 0.1
    mask = make_hexagon_mask(C_OUT, C_IN, KS)

    hi = jax.lax.Precision.HIGHEST  # exact-f32 on both sides for a tight check

    def ref_conv(x_, s, p):
        return jax.lax.conv_general_dilated(
            x_, weight * mask, window_strides=(s, s),
            padding=[(p, p), (p, p)],
            dimension_numbers=("NCHW", "OIHW", "NCHW"),
            precision=hi,
        ) + bias[None, :, None, None]

    # stride=1, f32 HIGHEST (bit-tight check).
    out1 = hexagon_conv2d(x, weight, mask, bias, stride=1, padding=PAD,
                          precision=hi)
    out1 = jax.block_until_ready(out1)
    np.testing.assert_allclose(np.asarray(out1), np.asarray(ref_conv(x, 1, PAD)),
                               rtol=1e-5, atol=1e-5)

    # stride=2, f32 HIGHEST (general stride via strided im2col).
    out2 = hexagon_conv2d(x, weight, mask, bias, stride=2, padding=PAD,
                          precision=hi)
    out2 = jax.block_until_ready(out2)
    np.testing.assert_allclose(np.asarray(out2), np.asarray(ref_conv(x, 2, PAD)),
                               rtol=1e-5, atol=1e-5)

    # bf16 operand path (production recommendation for v6e/v7x): f32 accumulate,
    # loose tolerance against the f32 reference.
    out_bf = hexagon_conv2d(x, weight, mask, bias, stride=1, padding=PAD,
                            precision=None, compute_dtype=jnp.bfloat16)
    out_bf = jax.block_until_ready(out_bf)
    np.testing.assert_allclose(np.asarray(out_bf), np.asarray(ref_conv(x, 1, PAD)),
                               rtol=1e-1, atol=1e-1)

    print("KERNEL_OK")
</pallas_src>

<mosaic_0001>
module attributes {stable_mosaic.version = 11 : i64} {
  func.func @_matmul_bias_kernel(%arg0: i32, %arg1: memref<128x36xf32, #tpu.memory_space<vmem>>, %arg2: memref<36x128xf32, #tpu.memory_space<vmem>>, %arg3: memref<1x128xf32, #tpu.memory_space<vmem>>, %arg4: memref<128x128xf32, #tpu.memory_space<vmem>>) attributes {dimension_semantics = [#tpu.dimension_semantics<parallel>], iteration_bounds = array<i64: 4>, scalar_prefetch = 0 : i64, scratch_operands = 0 : i64, tpu.core_type = #tpu.core_type<tc>, window_params = [{transform_indices = @transform_0, window_bounds = array<i64: 128, 36>}, {pipeline_mode = #tpu.pipeline_mode<synchronous>, transform_indices = @transform_1, window_bounds = array<i64: 36, 128>}, {pipeline_mode = #tpu.pipeline_mode<synchronous>, transform_indices = @transform_2, window_bounds = array<i64: 1, 128>}, {transform_indices = @transform_3, window_bounds = array<i64: 128, 128>}]} {
    %c0 = arith.constant 0 : index
    %c0_0 = arith.constant 0 : index
    %0 = vector.load %arg1[%c0, %c0_0] : memref<128x36xf32, #tpu.memory_space<vmem>>, vector<128x36xf32>
    %c0_1 = arith.constant 0 : index
    %c0_2 = arith.constant 0 : index
    %1 = vector.load %arg2[%c0_1, %c0_2] : memref<36x128xf32, #tpu.memory_space<vmem>>, vector<36x128xf32>
    %cst = arith.constant dense<0.000000e+00> : vector<128x128xf32>
    %2 = tpu.matmul %0, %1, %cst {dimension_numbers = #tpu.dot_dimension_numbers<[1], [0], [0], [1], [0, 0, 1, 1], [], []>, precision = #tpu.contract_precision<fp32>} : vector<128x36xf32>, vector<36x128xf32>, vector<128x128xf32> -> vector<128x128xf32>
    %c0_3 = arith.constant 0 : index
    %c0_4 = arith.constant 0 : index
    %3 = vector.load %arg3[%c0_3, %c0_4] : memref<1x128xf32, #tpu.memory_space<vmem>>, vector<1x128xf32>
    %4 = vector.broadcast %3 : vector<1x128xf32> to vector<128x128xf32>
    %5 = arith.addf %2, %4 : vector<128x128xf32>
    %c0_5 = arith.constant 0 : index
    %c0_6 = arith.constant 0 : index
    %6 = vector.load %arg4[%c0_5, %c0_6] : memref<128x128xf32, #tpu.memory_space<vmem>>, vector<128x128xf32>
    tpu.vector_store %arg4[%c0_5, %c0_6], %5 {strides = array<i32>} : memref<128x128xf32, #tpu.memory_space<vmem>>, vector<128x128xf32>,
    return
  }
  func.func @transform_0(%arg0: i32) -> (i32, i32) {
    %c0_i32 = arith.constant 0 : i32
    %c0_i32_0 = arith.constant 0 : i32
    return %arg0, %c0_i32 : i32, i32
  }
  func.func @transform_1(%arg0: i32) -> (i32, i32) {
    %c0_i32 = arith.constant 0 : i32
    %c0_i32_0 = arith.constant 0 : i32
    %c0_i32_1 = arith.constant 0 : i32
    return %c0_i32, %c0_i32_0 : i32, i32
  }
  func.func @transform_2(%arg0: i32) -> (i32, i32) {
    %c0_i32 = arith.constant 0 : i32
    %c0_i32_0 = arith.constant 0 : i32
    %c0_i32_1 = arith.constant 0 : i32
    return %c0_i32, %c0_i32_0 : i32, i32
  }
  func.func @transform_3(%arg0: i32) -> (i32, i32) {
    %c0_i32 = arith.constant 0 : i32
    %c0_i32_0 = arith.constant 0 : i32
    return %arg0, %c0_i32 : i32, i32
  }
}

</mosaic_0001>

<llo_original>
// kernel: tpu_custom_call.1
$region0: #{tpu_custom_call.1}
  #allocation0 [shape = 'u32[]', space=smem, size = 0x4, offset = 0x4, fixed_abs, tag = 'smem constant byte address 0x4 - core index']
  #allocation1 [shape = 'u32[144,128]{1,0:T(1,128)}', space=vmem, size = 0x12000, scoped, tag = 'internal scratch']
  %s0 = inlined_call_operand.vmem [shape: f32[512,36], index: 0, kind: input, shape index: {}]
  %s1 = inlined_call_operand.vmem [shape: f32[36,128], index: 1, kind: input, shape index: {}]
  %s2 = inlined_call_operand.vmem [shape: f32[1,128], index: 2, kind: input, shape index: {}]
  %s3 = inlined_call_operand.hbm [shape: f32[512,128], index: 3, kind: output, shape index: {}]
  %s4 = sld [smem:[#allocation0]]
  $region45: #{tpu_custom_call.1} parent=0
    _
  %s6 = ssub.s32 1, %s4
  %s7 = scalar_select 0, %s6, %s4
  $region1: #{tpu_custom_call.1} parent=0
    #allocation2 [shape = 'u8[131072]{0}', space=vmem, size = 0x20000, scoped, tag = 'output window, operand 0']
    #allocation3 [shape = 's32[2]{0}', space=sflag, size = 0x8, scoped, tag = 'scoped memory for tpu_custom_call.1']
    %8 = vsyncpa [#allocation3], 0
    %s9 = scalar_lea.sflag [#allocation3], 1
    %10 = vsyncpa %s9, 0
    loop: start=0, step=1, limit=6
    $region2: #{tpu_custom_call.1} parent=1 // loop_pre_header
      _
    $region3: #{tpu_custom_call.1} parent=1 // loop_header
      %s12 = sphi 0, %s16
      %p13 = scmp.ge.s32.totalorder %s12, 6
      %s22 = sphi 0, %s24
      %s25 = sphi 0, %s22
      %s26 = sphi 0, %s25
      %s42 = sphi 0, %s26
      %s46 = sphi 0, %s46
      %s48 = sphi 0, %s46
      %s49 = sphi 0, %s48
      %s63 = sphi 0, %s49
      %s67 = sphi 0, %s67
      %s69 = sphi 0, %s67
      %s70 = sphi 0, %s69
      %s84 = sphi 0, %s70
      %s90 = sphi 0, %s92
      %s93 = sphi 0, %s90
      %s94 = sphi 0, %s93
      %s110 = sphi 0, %s94
    $region4: #{tpu_custom_call.1} parent=1 // loop_header_branch
      %15 = sbr.rel (%p13) target = $region8
    $region5: #{tpu_custom_call.1} parent=1 // loop_body
      %s17 = ssub.s32 %s12, 1
      %s18 = ssub.s32 %s12, 2
      %s19 = sadd.s32 %s12, 1
      %s20 = ssub.s32 %s12, %s19
      %p21 = scmp.eq.s32.totalorder %s20, 0
      %s23 = sadd.s32 %s22, 1
      %s24 = scalar_select %p21, %s22, %s23
      %p27 = pneg %p21
      %p28 = scmp.eq.s32.totalorder %s12, 3
      %p29 = por %p27, %p28
      %p30 = scmp.ne.s32.totalorder %s22, %s25
      %p31 = scmp.eq.s32.totalorder %s12, 0
      %p32 = por %p30, %p31
      %p33 = scmp.ne.s32.totalorder %s22, %s25
      %p34 = scmp.eq.s32.totalorder %s17, 3
      %p35 = por %p33, %p34
      %p36 = scmp.ne.s32.totalorder %s25, %s26
      %p37 = scmp.eq.s32.totalorder %s17, 0
      %p38 = por %p36, %p37
      %p39 = scmp.ne.s32.totalorder %s25, %s26
      %p40 = scmp.eq.s32.totalorder %s18, 3
      %p41 = por %p39, %p40
      %p43 = scmp.ne.s32.totalorder %s26, %s42
      %p44 = scmp.eq.s32.totalorder %s18, 0
      %p45 = por %p43, %p44
      %s47 = sadd.s32 %s46, 1
      %p50 = scmp.eq.s32.totalorder %s12, 3
      %p51 = scmp.ne.s32.totalorder %s46, %s48
      %p52 = scmp.eq.s32.totalorder %s12, 0
      %p53 = por %p51, %p52
      %p54 = scmp.ne.s32.totalorder %s46, %s48
      %p55 = scmp.eq.s32.totalorder %s17, 3
      %p56 = por %p54, %p55
      %p57 = scmp.ne.s32.totalorder %s48, %s49
      %p58 = scmp.eq.s32.totalorder %s17, 0
      %p59 = por %p57, %p58
      %p60 = scmp.ne.s32.totalorder %s48, %s49
      %p61 = scmp.eq.s32.totalorder %s18, 3
      %p62 = por %p60, %p61
      %p64 = scmp.ne.s32.totalorder %s49, %s63
      %p65 = scmp.eq.s32.totalorder %s18, 0
      %p66 = por %p64, %p65
      %s68 = sadd.s32 %s67, 1
      %p71 = scmp.eq.s32.totalorder %s12, 3
      %p72 = scmp.ne.s32.totalorder %s67, %s69
      %p73 = scmp.eq.s32.totalorder %s12, 0
      %p74 = por %p72, %p73
      %p75 = scmp.ne.s32.totalorder %s67, %s69
      %p76 = scmp.eq.s32.totalorder %s17, 3
      %p77 = por %p75, %p76
      %p78 = scmp.ne.s32.totalorder %s69, %s70
      %p79 = scmp.eq.s32.totalorder %s17, 0
      %p80 = por %p78, %p79
      %p81 = scmp.ne.s32.totalorder %s69, %s70
      %p82 = scmp.eq.s32.totalorder %s18, 3
      %p83 = por %p81, %p82
      %p85 = scmp.ne.s32.totalorder %s70, %s84
      %p86 = scmp.eq.s32.totalorder %s18, 0
      %p87 = por %p85, %p86
      %s88 = ssub.s32 %s12, %s19
      %p89 = scmp.eq.s32.totalorder %s88, 0
      %s91 = sadd.s32 %s90, 1
      %s92 = scalar_select %p89, %s90, %s91
      %p95 = pneg %p89
      %p96 = scmp.eq.s32.totalorder %s12, 3
      %p97 = por %p95, %p96
      %p98 = scmp.ne.s32.totalorder %s90, %s93
      %p99 = scmp.eq.s32.totalorder %s12, 0
      %p100 = por %p98, %p99
      %p101 = scmp.ne.s32.totalorder %s90, %s93
      %p102 = scmp.eq.s32.totalorder %s17, 3
      %p103 = por %p101, %p102
      %p104 = scmp.ne.s32.totalorder %s93, %s94
      %p105 = scmp.eq.s32.totalorder %s17, 0
      %p106 = por %p104, %p105
      %p107 = scmp.ne.s32.totalorder %s93, %s94
      %p108 = scmp.eq.s32.totalorder %s18, 3
      %p109 = por %p107, %p108
      %p111 = scmp.ne.s32.totalorder %s94, %s110
      %p112 = scmp.eq.s32.totalorder %s18, 0
      %p113 = por %p111, %p112
      %p114 = scmp.le.s32.totalorder 1, %s12
      %p115 = scmp.lt.s32.totalorder %s12, 5
      %p116 = pnand %p114, %p115
      %p117 = pneg %p116
      // Predicated region
      $region9: #{tpu_custom_call.1} parent=5 // pred_check
        _
      $region10: #{tpu_custom_call.1} parent=5 // pred_check_branch
        %119 = sbr.rel (%p116) target = $region12
      $region11: #{tpu_custom_call.1} parent=5 // pred_region
        %s120 = ssub.s32 %s12, 1
        // Predicated region
        $region13: #{tpu_custom_call.1} parent=11 // pred_check
          %p121 = pneg %p59
        $region14: #{tpu_custom_call.1} parent=11 // pred_check_branch
          %123 = sbr.rel (%p121) target = $region16
        $region15: #{tpu_custom_call.1} parent=11 // pred_region
          _
        $region16: #{tpu_custom_call.1} parent=11 // pred_fallthru
          _
        // Predicated region
        $region17: #{tpu_custom_call.1} parent=11 // pred_check
          %p124 = pneg %p80
        $region18: #{tpu_custom_call.1} parent=11 // pred_check_branch
          %126 = sbr.rel (%p124) target = $region20
        $region19: #{tpu_custom_call.1} parent=11 // pred_region
          _
        $region20: #{tpu_custom_call.1} parent=11 // pred_fallthru
          _
      $region12: #{tpu_custom_call.1} parent=5 // pred_fallthru
        _
      %p127 = scmp.lt.s32.totalorder %s12, 4
      // Predicated region
      $region21: #{tpu_custom_call.1} parent=5 // pred_check
        %p128 = pneg %p127
      $region22: #{tpu_custom_call.1} parent=5 // pred_check_branch
        %130 = sbr.rel (%p128) target = $region24
      $region23: #{tpu_custom_call.1} parent=5 // pred_region
        // Predicated region
        $region25: #{tpu_custom_call.1} parent=23 // pred_check
          %p131 = pneg %p32
        $region26: #{tpu_custom_call.1} parent=23 // pred_check_branch
          %133 = sbr.rel (%p131) target = $region28
        $region27: #{tpu_custom_call.1} parent=23 // pred_region
          %s134 = smul.u32 16, %s12
          %p135 = scmp.lt.s32.totalorder %s134, 63
          %s136 = scalar_select %p135, %s134, 63
          %s137 = smul.addr %s136, 8
          %s138 = scalar_lea.vmem %s0, %s137
          %s139 = smul.u32 16, %s12
        $region28: #{tpu_custom_call.1} parent=23 // pred_fallthru
          _
      $region24: #{tpu_custom_call.1} parent=5 // pred_fallthru
        _
      %p140 = scmp.le.s32.totalorder 1, %s12
      %p141 = scmp.lt.s32.totalorder %s12, 5
      %p142 = pnand %p140, %p141
      %p143 = pneg %p142
      // Predicated region
      $region29: #{tpu_custom_call.1} parent=5 // pred_check
        _
      $region30: #{tpu_custom_call.1} parent=5 // pred_check_branch
        %145 = sbr.rel (%p142) target = $region32
      $region31: #{tpu_custom_call.1} parent=5 // pred_region
        %s146 = ssub.s32 %s12, 1
        %s147 = smul.u32 16, %s17
        %p148 = scmp.lt.s32.totalorder %s147, 63
        %s149 = scalar_select %p148, %s147, 63
        %s150 = smul.addr %s149, 8
        %s151 = scalar_lea.vmem %s0, %s150
        %p152 = pneg %p38
        %p153 = pneg %p35
        %p154 = pneg %p59
        %p155 = pneg %p56
        %p156 = pneg %p80
        %p157 = pneg %p77
        %p158 = pneg %p106
        %p159 = pneg %p103
        %s160 = sand.u32 %s93, 1
        %s161 = scalar_lea.sflag [#allocation3], %s160
        %s162 = sand.u32 %s93, 1
        %s163 = smul.addr %s162, 128
        %s164 = scalar_lea.vmem [#allocation2], %s163
        %s165 = smul.u32 16, %s17
        %p166 = scmp.lt.s32.totalorder %s165, 63
        %s167 = scalar_select %p166, %s165, 63
        %s168 = smul.addr %s167, 8
        %s169 = scalar_lea.vmem %s0, %s168
        %s170 = smul.u32 16, %s17
        %s171 = smul.u32 16, %s17
        %v172 = vld [vmem:[%s169] sm:$0xff]
        %v173 = vld [vmem:[%s169 + $0x8] sm:$0xff]
        %v174 = vld [vmem:[%s169 + $0x10] sm:$0xff]
        %v175 = vld [vmem:[%s169 + $0x18] sm:$0xff]
        %v176 = vld [vmem:[%s169 + $0x20] sm:$0xff]
        %v177 = vld [vmem:[%s169 + $0x28] sm:$0xff]
        %v178 = vld [vmem:[%s169 + $0x30] sm:$0xff]
        %v179 = vld [vmem:[%s169 + $0x38] sm:$0xff]
        %v180 = vld [vmem:[%s169 + $0x40] sm:$0xff]
        %v181 = vld [vmem:[%s169 + $0x48] sm:$0xff]
        %v182 = vld [vmem:[%s169 + $0x50] sm:$0xff]
        %v183 = vld [vmem:[%s169 + $0x58] sm:$0xff]
        %v184 = vld [vmem:[%s169 + $0x60] sm:$0xff]
        %v185 = vld [vmem:[%s169 + $0x68] sm:$0xff]
        %v186 = vld [vmem:[%s169 + $0x70] sm:$0xff]
        %v187 = vld [vmem:[%s169 + $0x78] sm:$0xff]
        %v188 = vld [vmem:[%s1] sm:$0xff]
        %v189 = vld [vmem:[%s1 + $0x8] sm:$0xff]
        %v190 = vld [vmem:[%s1 + $0x10] sm:$0xff]
        %v191 = vld [vmem:[%s1 + $0x18] sm:$0xff]
        %v192 = vld [vmem:[%s1 + $0x20] sm:$0xf]
        %v193 = vld [vmem:[%s2] sm:$0x1]
        %v195 = vlaneseq
        %v196 = vshrl.u32 %v195, 7
        %v197 = vsub.s32 0, %v196
        %v198 = vrot.slane %v193, %v197
        %vm200 = vcmask 293888
        %v202 = vsel %vm200, %v172, 0
        %v205 = vsel %vm200, %v173, 0
        %v208 = vsel %vm200, %v174, 0
        %v211 = vsel %vm200, %v175, 0
        %v214 = vsel %vm200, %v176, 0
        %v217 = vsel %vm200, %v177, 0
        %v220 = vsel %vm200, %v178, 0
        %v223 = vsel %vm200, %v179, 0
        %v226 = vsel %vm200, %v180, 0
        %v229 = vsel %vm200, %v181, 0
        %v232 = vsel %vm200, %v182, 0
        %v235 = vsel %vm200, %v183, 0
        %v238 = vsel %vm200, %v184, 0
        %v241 = vsel %vm200, %v185, 0
        %v244 = vsel %vm200, %v186, 0
        %v247 = vsel %vm200, %v187, 0
        %vm249 = vcmask 1043456
        %v251 = vsel %vm249, %v192, 0
        %253 = vmatprep.subr.mxu0 0.0
        %254 = vmatpush1.msra.mxu0 0.0
        %255 = vmatprep.subr.mxu0 0.0
        %256 = vmatpush1.msra.mxu0 0.0
        %257 = vmatprep.subr.mxu0 0.0
        %258 = vmatpush1.msra.mxu0 0.0
        %259 = vmatprep.subr.mxu0 0.0
        %260 = vmatpush1.msra.mxu0 0.0
        %261 = vmatprep.subr.mxu0 0.0
        %262 = vmatpush1.msra.mxu0 0.0
        %263 = vmatprep.subr.mxu0 0.0
        %264 = vmatpush1.msra.mxu0 0.0
        %265 = vmatprep.subr.mxu0 0.0
        %266 = vmatpush1.msra.mxu0 0.0
        %267 = vmatprep.subr.mxu0 0.0
        %268 = vmatpush1.msra.mxu0 0.0
        %269 = vmatprep.subr.mxu0 0.0
        %270 = vmatpush1.msra.mxu0 0.0
        %271 = vmatprep.subr.mxu0 0.0
        %272 = vmatpush1.msra.mxu0 0.0
        %273 = vmatprep.subr.mxu0 0.0
        %274 = vmatpush1.msra.mxu0 0.0
        %275 = vmatprep.subr.mxu0 0.0
        %v276 = vand.u32 %v251, 4294901760
        %277 = vmatpush1.msra.mxu0 %v276
        %278 = vmatprep.subr.mxu0 0.0
        %v279 = vand.u32 %v191, 4294901760
        %280 = vmatpush1.msra.mxu0 %v279
        %281 = vmatprep.subr.mxu0 0.0
        %v282 = vand.u32 %v190, 4294901760
        %283 = vmatpush1.msra.mxu0 %v282
        %284 = vmatprep.subr.mxu0 0.0
        %v285 = vand.u32 %v189, 4294901760
        %286 = vmatpush1.msra.mxu0 %v285
        %287 = vmatprep.subr.mxu0 0.0
        %v288 = vand.u32 %v188, 4294901760
        %289 = vmatpush1.msra.mxu0 %v288
        %290 = vmatprep.subr.mxu0 0.0
        %291 = vmatpush2.msra.mxu0 0.0
        %292 = vmatprep.subr.mxu0 0.0
        %293 = vmatpush2.msra.mxu0 0.0
        %294 = vmatprep.subr.mxu0 0.0
        %295 = vmatpush2.msra.mxu0 0.0
        %296 = vmatprep.subr.mxu0 0.0
        %297 = vmatpush2.msra.mxu0 0.0
        %298 = vmatprep.subr.mxu0 0.0
        %299 = vmatpush2.msra.mxu0 0.0
        %300 = vmatprep.subr.mxu0 0.0
        %301 = vmatpush2.msra.mxu0 0.0
        %302 = vmatprep.subr.mxu0 0.0
        %303 = vmatpush2.msra.mxu0 0.0
        %304 = vmatprep.subr.mxu0 0.0
        %305 = vmatpush2.msra.mxu0 0.0
        %306 = vmatprep.subr.mxu0 0.0
        %307 = vmatpush2.msra.mxu0 0.0
        %308 = vmatprep.subr.mxu0 0.0
        %309 = vmatpush2.msra.mxu0 0.0
        %310 = vmatprep.subr.mxu0 0.0
        %311 = vmatpush2.msra.mxu0 0.0
        %312 = vmatprep.subr.mxu0 0.0
        %313 = vmatpush2.msra.mxu0 0.0
        %314 = vmatprep.subr.mxu0 0.0
        %315 = vmatpush2.msra.mxu0 0.0
        %316 = vmatprep.subr.mxu0 0.0
        %317 = vmatpush2.msra.mxu0 0.0
        %318 = vmatprep.subr.mxu0 0.0
        %319 = vmatpush2.msra.mxu0 0.0
        %320 = vmatprep.subr.mxu0 0.0
        %321 = vmatpush2.msra.mxu0 0.0
        %322 = vmatprep.mubr.f32.mxu0 0.0
        %v323 = vand.u32 %v202, 4294901760
        %v324 = vsub.f32 %v202, %v323
        %v325 = vand.u32 %v324, 4294901760
        %v326 = vsub.f32 %v324, %v325
        %v327 = vand.u32 %v326, 4294901760
        %328 = vmatmul.mubr.f32.gmra.mxu0 %v327
        %v329 = vpop.f32.mrf.mxu0
        %v330 = vadd.f32 %v198, %v329
        %v331 = vpop.f32.mrf.mxu0
        %332 = vmatprep.mubr.f32.mxu0 0.0
        %v333 = vand.u32 %v205, 4294901760
        %v334 = vsub.f32 %v205, %v333
        %v335 = vand.u32 %v334, 4294901760
        %v336 = vsub.f32 %v334, %v335
        %v337 = vand.u32 %v336, 4294901760
        %338 = vmatmul.mubr.f32.gmra.mxu0 %v337
        %v339 = vpop.f32.mrf.mxu0
        %v340 = vadd.f32 %v198, %v339
        %v341 = vpop.f32.mrf.mxu0
        %342 = vmatprep.mubr.f32.mxu0 0.0
        %v343 = vand.u32 %v208, 4294901760
        %v344 = vsub.f32 %v208, %v343
        %v345 = vand.u32 %v344, 4294901760
        %v346 = vsub.f32 %v344, %v345
        %v347 = vand.u32 %v346, 4294901760
        %348 = vmatmul.mubr.f32.gmra.mxu0 %v347
        %v349 = vpop.f32.mrf.mxu0
        %v350 = vadd.f32 %v198, %v349
        %v351 = vpop.f32.mrf.mxu0
        %352 = vmatprep.mubr.f32.mxu0 0.0
        %v353 = vand.u32 %v211, 4294901760
        %v354 = vsub.f32 %v211, %v353
        %v355 = vand.u32 %v354, 4294901760
        %v356 = vsub.f32 %v354, %v355
        %v357 = vand.u32 %v356, 4294901760
        %358 = vmatmul.mubr.f32.gmra.mxu0 %v357
        %v359 = vpop.f32.mrf.mxu0
        %v360 = vadd.f32 %v198, %v359
        %v361 = vpop.f32.mrf.mxu0
        %362 = vmatprep.mubr.f32.mxu0 0.0
        %v363 = vand.u32 %v214, 4294901760
        %v364 = vsub.f32 %v214, %v363
        %v365 = vand.u32 %v364, 4294901760
        %v366 = vsub.f32 %v364, %v365
        %v367 = vand.u32 %v366, 4294901760
        %368 = vmatmul.mubr.f32.gmra.mxu0 %v367
        %v369 = vpop.f32.mrf.mxu0
        %v370 = vadd.f32 %v198, %v369
        %v371 = vpop.f32.mrf.mxu0
        %372 = vmatprep.mubr.f32.mxu0 0.0
        %v373 = vand.u32 %v217, 4294901760
        %v374 = vsub.f32 %v217, %v373
        %v375 = vand.u32 %v374, 4294901760
        %v376 = vsub.f32 %v374, %v375
        %v377 = vand.u32 %v376, 4294901760
        %378 = vmatmul.mubr.f32.gmra.mxu0 %v377
        %v379 = vpop.f32.mrf.mxu0
        %v380 = vadd.f32 %v198, %v379
        %v381 = vpop.f32.mrf.mxu0
        %382 = vmatprep.mubr.f32.mxu0 0.0
        %v383 = vand.u32 %v220, 4294901760
        %v384 = vsub.f32 %v220, %v383
        %v385 = vand.u32 %v384, 4294901760
        %v386 = vsub.f32 %v384, %v385
        %v387 = vand.u32 %v386, 4294901760
        %388 = vmatmul.mubr.f32.gmra.mxu0 %v387
        %v389 = vpop.f32.mrf.mxu0
        %v390 = vadd.f32 %v198, %v389
        %v391 = vpop.f32.mrf.mxu0
        %392 = vmatprep.mubr.f32.mxu0 0.0
        %v393 = vand.u32 %v223, 4294901760
        %v394 = vsub.f32 %v223, %v393
        %v395 = vand.u32 %v394, 4294901760
        %v396 = vsub.f32 %v394, %v395
        %v397 = vand.u32 %v396, 4294901760
        %398 = vmatmul.mubr.f32.gmra.mxu0 %v397
        %v399 = vpop.f32.mrf.mxu0
        %v400 = vadd.f32 %v198, %v399
        %v401 = vpop.f32.mrf.mxu0
        %402 = vmatprep.mubr.f32.mxu0 0.0
        %v403 = vand.u32 %v226, 4294901760
        %v404 = vsub.f32 %v226, %v403
        %v405 = vand.u32 %v404, 4294901760
        %v406 = vsub.f32 %v404, %v405
        %v407 = vand.u32 %v406, 4294901760
        %408 = vmatmul.mubr.f32.gmra.mxu0 %v407
        %v409 = vpop.f32.mrf.mxu0
        %v410 = vadd.f32 %v198, %v409
        %v411 = vpop.f32.mrf.mxu0
        %412 = vmatprep.mubr.f32.mxu0 0.0
        %v413 = vand.u32 %v229, 4294901760
        %v414 = vsub.f32 %v229, %v413
        %v415 = vand.u32 %v414, 4294901760
        %v416 = vsub.f32 %v414, %v415
        %v417 = vand.u32 %v416, 4294901760
        %418 = vmatmul.mubr.f32.gmra.mxu0 %v417
        %v419 = vpop.f32.mrf.mxu0
        %v420 = vadd.f32 %v198, %v419
        %v421 = vpop.f32.mrf.mxu0
        %422 = vmatprep.mubr.f32.mxu0 0.0
        %v423 = vand.u32 %v232, 4294901760
        %v424 = vsub.f32 %v232, %v423
        %v425 = vand.u32 %v424, 4294901760
        %v426 = vsub.f32 %v424, %v425
        %v427 = vand.u32 %v426, 4294901760
        %428 = vmatmul.mubr.f32.gmra.mxu0 %v427
        %v429 = vpop.f32.mrf.mxu0
        %v430 = vadd.f32 %v198, %v429
        %v431 = vpop.f32.mrf.mxu0
        %432 = vmatprep.mubr.f32.mxu0 0.0
        %v433 = vand.u32 %v235, 4294901760
        %v434 = vsub.f32 %v235, %v433
        %v435 = vand.u32 %v434, 4294901760
        %v436 = vsub.f32 %v434, %v435
        %v437 = vand.u32 %v436, 4294901760
        %438 = vmatmul.mubr.f32.gmra.mxu0 %v437
        %v439 = vpop.f32.mrf.mxu0
        %v440 = vadd.f32 %v198, %v439
        %v441 = vpop.f32.mrf.mxu0
        %442 = vmatprep.mubr.f32.mxu0 0.0
        %v443 = vand.u32 %v238, 4294901760
        %v444 = vsub.f32 %v238, %v443
        %v445 = vand.u32 %v444, 4294901760
        %v446 = vsub.f32 %v444, %v445
        %v447 = vand.u32 %v446, 4294901760
        %448 = vmatmul.mubr.f32.gmra.mxu0 %v447
        %v449 = vpop.f32.mrf.mxu0
        %v450 = vadd.f32 %v198, %v449
        %v451 = vpop.f32.mrf.mxu0
        %452 = vmatprep.mubr.f32.mxu0 0.0
        %v453 = vand.u32 %v241, 4294901760
        %v454 = vsub.f32 %v241, %v453
        %v455 = vand.u32 %v454, 4294901760
        %v456 = vsub.f32 %v454, %v455
        %v457 = vand.u32 %v456, 4294901760
        %458 = vmatmul.mubr.f32.gmra.mxu0 %v457
        %v459 = vpop.f32.mrf.mxu0
        %v460 = vadd.f32 %v198, %v459
        %v461 = vpop.f32.mrf.mxu0
        %462 = vmatprep.mubr.f32.mxu0 0.0
        %v463 = vand.u32 %v244, 4294901760
        %v464 = vsub.f32 %v244, %v463
        %v465 = vand.u32 %v464, 4294901760
        %v466 = vsub.f32 %v464, %v465
        %v467 = vand.u32 %v466, 4294901760
        %468 = vmatmul.mubr.f32.gmra.mxu0 %v467
        %v469 = vpop.f32.mrf.mxu0
        %v470 = vadd.f32 %v198, %v469
        %v471 = vpop.f32.mrf.mxu0
        %472 = vmatprep.mubr.f32.mxu0 0.0
        %v473 = vand.u32 %v247, 4294901760
        %v474 = vsub.f32 %v247, %v473
        %v475 = vand.u32 %v474, 4294901760
        %v476 = vsub.f32 %v474, %v475
        %v477 = vand.u32 %v476, 4294901760
        %478 = vmatmul.mubr.f32.gmra.mxu0 %v477
        %v479 = vpop.f32.mrf.mxu0
        %v480 = vadd.f32 %v198, %v479
        %v481 = vpop.f32.mrf.mxu0
        %482 = vdwg.mxu0
        %483 = vmatprep.subr.mxu0 0.0
        %484 = vmatpush1.msra.mxu0 0.0
        %485 = vmatprep.subr.mxu0 0.0
        %486 = vmatpush1.msra.mxu0 0.0
        %487 = vmatprep.subr.mxu0 0.0
        %488 = vmatpush1.msra.mxu0 0.0
        %489 = vmatprep.subr.mxu0 0.0
        %490 = vmatpush1.msra.mxu0 0.0
        %491 = vmatprep.subr.mxu0 0.0
        %492 = vmatpush1.msra.mxu0 0.0
        %493 = vmatprep.subr.mxu0 0.0
        %494 = vmatpush1.msra.mxu0 0.0
        %495 = vmatprep.subr.mxu0 0.0
        %496 = vmatpush1.msra.mxu0 0.0
        %497 = vmatprep.subr.mxu0 0.0
        %498 = vmatpush1.msra.mxu0 0.0
        %499 = vmatprep.subr.mxu0 0.0
        %500 = vmatpush1.msra.mxu0 0.0
        %501 = vmatprep.subr.mxu0 0.0
        %502 = vmatpush1.msra.mxu0 0.0
        %503 = vmatprep.subr.mxu0 0.0
        %504 = vmatpush1.msra.mxu0 0.0
        %505 = vmatprep.subr.mxu0 0.0
        %v506 = vand.u32 %v251, 4294901760
        %v507 = vsub.f32 %v251, %v506
        %v508 = vand.u32 %v507, 4294901760
        %v509 = vsub.f32 %v507, %v508
        %v510 = vand.u32 %v509, 4294901760
        %511 = vmatpush1.msra.mxu0 %v510
        %512 = vmatprep.subr.mxu0 0.0
        %v513 = vand.u32 %v191, 4294901760
        %v514 = vsub.f32 %v191, %v513
        %v515 = vand.u32 %v514, 4294901760
        %v516 = vsub.f32 %v514, %v515
        %v517 = vand.u32 %v516, 4294901760
        %518 = vmatpush1.msra.mxu0 %v517
        %519 = vmatprep.subr.mxu0 0.0
        %v520 = vand.u32 %v190, 4294901760
        %v521 = vsub.f32 %v190, %v520
        %v522 = vand.u32 %v521, 4294901760
        %v523 = vsub.f32 %v521, %v522
        %v524 = vand.u32 %v523, 4294901760
        %525 = vmatpush1.msra.mxu0 %v524
        %526 = vmatprep.subr.mxu0 0.0
        %v527 = vand.u32 %v189, 4294901760
        %v528 = vsub.f32 %v189, %v527
        %v529 = vand.u32 %v528, 4294901760
        %v530 = vsub.f32 %v528, %v529
        %v531 = vand.u32 %v530, 4294901760
        %532 = vmatpush1.msra.mxu0 %v531
        %533 = vmatprep.subr.mxu0 0.0
        %v534 = vand.u32 %v188, 4294901760
        %v535 = vsub.f32 %v188, %v534
        %v536 = vand.u32 %v535, 4294901760
        %v537 = vsub.f32 %v535, %v536
        %v538 = vand.u32 %v537, 4294901760
        %539 = vmatpush1.msra.mxu0 %v538
        %540 = vmatprep.subr.mxu0 0.0
        %541 = vmatpush2.msra.mxu0 0.0
        %542 = vmatprep.subr.mxu0 0.0
        %543 = vmatpush2.msra.mxu0 0.0
        %544 = vmatprep.subr.mxu0 0.0
        %545 = vmatpush2.msra.mxu0 0.0
        %546 = vmatprep.subr.mxu0 0.0
        %547 = vmatpush2.msra.mxu0 0.0
        %548 = vmatprep.subr.mxu0 0.0
        %549 = vmatpush2.msra.mxu0 0.0
        %550 = vmatprep.subr.mxu0 0.0
        %551 = vmatpush2.msra.mxu0 0.0
        %552 = vmatprep.subr.mxu0 0.0
        %553 = vmatpush2.msra.mxu0 0.0
        %554 = vmatprep.subr.mxu0 0.0
        %555 = vmatpush2.msra.mxu0 0.0
        %556 = vmatprep.subr.mxu0 0.0
        %557 = vmatpush2.msra.mxu0 0.0
        %558 = vmatprep.subr.mxu0 0.0
        %559 = vmatpush2.msra.mxu0 0.0
        %560 = vmatprep.subr.mxu0 0.0
        %561 = vmatpush2.msra.mxu0 0.0
        %562 = vmatprep.subr.mxu0 0.0
        %563 = vmatpush2.msra.mxu0 0.0
        %564 = vmatprep.subr.mxu0 0.0
        %565 = vmatpush2.msra.mxu0 0.0
        %566 = vmatprep.subr.mxu0 0.0
        %567 = vmatpush2.msra.mxu0 0.0
        %568 = vmatprep.subr.mxu0 0.0
        %569 = vmatpush2.msra.mxu0 0.0
        %570 = vmatprep.subr.mxu0 0.0
        %571 = vmatpush2.msra.mxu0 0.0
        %572 = vmatprep.mubr.f32.mxu0 0.0
        %v573 = vand.u32 %v202, 4294901760
        %574 = vmatmul.mubr.f32.gmra.mxu0 %v573
        %v575 = vpop.f32.mrf.mxu0
        %v576 = vadd.f32 %v330, %v575
        %v577 = vpop.f32.mrf.mxu0
        %578 = vmatprep.mubr.f32.mxu0 0.0
        %v579 = vand.u32 %v205, 4294901760
        %580 = vmatmul.mubr.f32.gmra.mxu0 %v579
        %v581 = vpop.f32.mrf.mxu0
        %v582 = vadd.f32 %v340, %v581
        %v583 = vpop.f32.mrf.mxu0
        %584 = vmatprep.mubr.f32.mxu0 0.0
        %v585 = vand.u32 %v208, 4294901760
        %586 = vmatmul.mubr.f32.gmra.mxu0 %v585
        %v587 = vpop.f32.mrf.mxu0
        %v588 = vadd.f32 %v350, %v587
        %v589 = vpop.f32.mrf.mxu0
        %590 = vmatprep.mubr.f32.mxu0 0.0
        %v591 = vand.u32 %v211, 4294901760
        %592 = vmatmul.mubr.f32.gmra.mxu0 %v591
        %v593 = vpop.f32.mrf.mxu0
        %v594 = vadd.f32 %v360, %v593
        %v595 = vpop.f32.mrf.mxu0
        %596 = vmatprep.mubr.f32.mxu0 0.0
        %v597 = vand.u32 %v214, 4294901760
        %598 = vmatmul.mubr.f32.gmra.mxu0 %v597
        %v599 = vpop.f32.mrf.mxu0
        %v600 = vadd.f32 %v370, %v599
        %v601 = vpop.f32.mrf.mxu0
        %602 = vmatprep.mubr.f32.mxu0 0.0
        %v603 = vand.u32 %v217, 4294901760
        %604 = vmatmul.mubr.f32.gmra.mxu0 %v603
        %v605 = vpop.f32.mrf.mxu0
        %v606 = vadd.f32 %v380, %v605
        %v607 = vpop.f32.mrf.mxu0
        %608 = vmatprep.mubr.f32.mxu0 0.0
        %v609 = vand.u32 %v220, 4294901760
        %610 = vmatmul.mubr.f32.gmra.mxu0 %v609
        %v611 = vpop.f32.mrf.mxu0
        %v612 = vadd.f32 %v390, %v611
        %v613 = vpop.f32.mrf.mxu0
        %614 = vmatprep.mubr.f32.mxu0 0.0
        %v615 = vand.u32 %v223, 4294901760
        %616 = vmatmul.mubr.f32.gmra.mxu0 %v615
        %v617 = vpop.f32.mrf.mxu0
        %v618 = vadd.f32 %v400, %v617
        %v619 = vpop.f32.mrf.mxu0
        %620 = vmatprep.mubr.f32.mxu0 0.0
        %v621 = vand.u32 %v226, 4294901760
        %622 = vmatmul.mubr.f32.gmra.mxu0 %v621
        %v623 = vpop.f32.mrf.mxu0
        %v624 = vadd.f32 %v410, %v623
        %v625 = vpop.f32.mrf.mxu0
        %626 = vmatprep.mubr.f32.mxu0 0.0
        %v627 = vand.u32 %v229, 4294901760
        %628 = vmatmul.mubr.f32.gmra.mxu0 %v627
        %v629 = vpop.f32.mrf.mxu0
        %v630 = vadd.f32 %v420, %v629
        %v631 = vpop.f32.mrf.mxu0
        %632 = vmatprep.mubr.f32.mxu0 0.0
        %v633 = vand.u32 %v232, 4294901760
        %634 = vmatmul.mubr.f32.gmra.mxu0 %v633
        %v635 = vpop.f32.mrf.mxu0
        %v636 = vadd.f32 %v430, %v635
        %v637 = vpop.f32.mrf.mxu0
        %638 = vmatprep.mubr.f32.mxu0 0.0
        %v639 = vand.u32 %v235, 4294901760
        %640 = vmatmul.mubr.f32.gmra.mxu0 %v639
        %v641 = vpop.f32.mrf.mxu0
        %v642 = vadd.f32 %v440, %v641
        %v643 = vpop.f32.mrf.mxu0
        %644 = vmatprep.mubr.f32.mxu0 0.0
        %v645 = vand.u32 %v238, 4294901760
        %646 = vmatmul.mubr.f32.gmra.mxu0 %v645
        %v647 = vpop.f32.mrf.mxu0
        %v648 = vadd.f32 %v450, %v647
        %v649 = vpop.f32.mrf.mxu0
        %650 = vmatprep.mubr.f32.mxu0 0.0
        %v651 = vand.u32 %v241, 4294901760
        %652 = vmatmul.mubr.f32.gmra.mxu0 %v651
        %v653 = vpop.f32.mrf.mxu0
        %v654 = vadd.f32 %v460, %v653
        %v655 = vpop.f32.mrf.mxu0
        %656 = vmatprep.mubr.f32.mxu0 0.0
        %v657 = vand.u32 %v244, 4294901760
        %658 = vmatmul.mubr.f32.gmra.mxu0 %v657
        %v659 = vpop.f32.mrf.mxu0
        %v660 = vadd.f32 %v470, %v659
        %v661 = vpop.f32.mrf.mxu0
        %662 = vmatprep.mubr.f32.mxu0 0.0
        %v663 = vand.u32 %v247, 4294901760
        %664 = vmatmul.mubr.f32.gmra.mxu0 %v663
        %v665 = vpop.f32.mrf.mxu0
        %v666 = vadd.f32 %v480, %v665
        %v667 = vpop.f32.mrf.mxu0
        %668 = vdwg.mxu0
        %669 = vmatprep.subr.mxu0 0.0
        %670 = vmatpush1.msra.mxu0 0.0
        %671 = vmatprep.subr.mxu0 0.0
        %672 = vmatpush1.msra.mxu0 0.0
        %673 = vmatprep.subr.mxu0 0.0
        %674 = vmatpush1.msra.mxu0 0.0
        %675 = vmatprep.subr.mxu0 0.0
        %676 = vmatpush1.msra.mxu0 0.0
        %677 = vmatprep.subr.mxu0 0.0
        %678 = vmatpush1.msra.mxu0 0.0
        %679 = vmatprep.subr.mxu0 0.0
        %680 = vmatpush1.msra.mxu0 0.0
        %681 = vmatprep.subr.mxu0 0.0
        %682 = vmatpush1.msra.mxu0 0.0
        %683 = vmatprep.subr.mxu0 0.0
        %684 = vmatpush1.msra.mxu0 0.0
        %685 = vmatprep.subr.mxu0 0.0
        %686 = vmatpush1.msra.mxu0 0.0
        %687 = vmatprep.subr.mxu0 0.0
        %688 = vmatpush1.msra.mxu0 0.0
        %689 = vmatprep.subr.mxu0 0.0
        %690 = vmatpush1.msra.mxu0 0.0
        %691 = vmatprep.subr.mxu0 0.0
        %v692 = vand.u32 %v251, 4294901760
        %v693 = vsub.f32 %v251, %v692
        %694 = vmatpush1.msra.mxu0 %v693
        %695 = vmatprep.subr.mxu0 0.0
        %v696 = vand.u32 %v191, 4294901760
        %v697 = vsub.f32 %v191, %v696
        %698 = vmatpush1.msra.mxu0 %v697
        %699 = vmatprep.subr.mxu0 0.0
        %v700 = vand.u32 %v190, 4294901760
        %v701 = vsub.f32 %v190, %v700
        %702 = vmatpush1.msra.mxu0 %v701
        %703 = vmatprep.subr.mxu0 0.0
        %v704 = vand.u32 %v189, 4294901760
        %v705 = vsub.f32 %v189, %v704
        %706 = vmatpush1.msra.mxu0 %v705
        %707 = vmatprep.subr.mxu0 0.0
        %v708 = vand.u32 %v188, 4294901760
        %v709 = vsub.f32 %v188, %v708
        %710 = vmatpush1.msra.mxu0 %v709
        %711 = vmatprep.subr.mxu0 0.0
        %712 = vmatpush2.msra.mxu0 0.0
        %713 = vmatprep.subr.mxu0 0.0
        %714 = vmatpush2.msra.mxu0 0.0
        %715 = vmatprep.subr.mxu0 0.0
        %716 = vmatpush2.msra.mxu0 0.0
        %717 = vmatprep.subr.mxu0 0.0
        %718 = vmatpush2.msra.mxu0 0.0
        %719 = vmatprep.subr.mxu0 0.0
        %720 = vmatpush2.msra.mxu0 0.0
        %721 = vmatprep.subr.mxu0 0.0
        %722 = vmatpush2.msra.mxu0 0.0
        %723 = vmatprep.subr.mxu0 0.0
        %724 = vmatpush2.msra.mxu0 0.0
        %725 = vmatprep.subr.mxu0 0.0
        %726 = vmatpush2.msra.mxu0 0.0
        %727 = vmatprep.subr.mxu0 0.0
        %728 = vmatpush2.msra.mxu0 0.0
        %729 = vmatprep.subr.mxu0 0.0
        %730 = vmatpush2.msra.mxu0 0.0
        %731 = vmatprep.subr.mxu0 0.0
        %732 = vmatpush2.msra.mxu0 0.0
        %733 = vmatprep.subr.mxu0 0.0
        %734 = vmatpush2.msra.mxu0 0.0
        %735 = vmatprep.subr.mxu0 0.0
        %736 = vmatpush2.msra.mxu0 0.0
        %737 = vmatprep.subr.mxu0 0.0
        %738 = vmatpush2.msra.mxu0 0.0
        %739 = vmatprep.subr.mxu0 0.0
        %740 = vmatpush2.msra.mxu0 0.0
        %741 = vmatprep.subr.mxu0 0.0
        %742 = vmatpush2.msra.mxu0 0.0
        %743 = vmatprep.mubr.f32.mxu0 0.0
        %v744 = vand.u32 %v202, 4294901760
        %v745 = vsub.f32 %v202, %v744
        %746 = vmatmul.mubr.f32.gmra.mxu0 %v745
        %v747 = vpop.f32.mrf.mxu0
        %v748 = vadd.f32 %v576, %v747
        %v749 = vpop.f32.mrf.mxu0
        %750 = vmatprep.mubr.f32.mxu0 0.0
        %v751 = vand.u32 %v205, 4294901760
        %v752 = vsub.f32 %v205, %v751
        %753 = vmatmul.mubr.f32.gmra.mxu0 %v752
        %v754 = vpop.f32.mrf.mxu0
        %v755 = vadd.f32 %v582, %v754
        %v756 = vpop.f32.mrf.mxu0
        %757 = vmatprep.mubr.f32.mxu0 0.0
        %v758 = vand.u32 %v208, 4294901760
        %v759 = vsub.f32 %v208, %v758
        %760 = vmatmul.mubr.f32.gmra.mxu0 %v759
        %v761 = vpop.f32.mrf.mxu0
        %v762 = vadd.f32 %v588, %v761
        %v763 = vpop.f32.mrf.mxu0
        %764 = vmatprep.mubr.f32.mxu0 0.0
        %v765 = vand.u32 %v211, 4294901760
        %v766 = vsub.f32 %v211, %v765
        %767 = vmatmul.mubr.f32.gmra.mxu0 %v766
        %v768 = vpop.f32.mrf.mxu0
        %v769 = vadd.f32 %v594, %v768
        %v770 = vpop.f32.mrf.mxu0
        %771 = vmatprep.mubr.f32.mxu0 0.0
        %v772 = vand.u32 %v214, 4294901760
        %v773 = vsub.f32 %v214, %v772
        %774 = vmatmul.mubr.f32.gmra.mxu0 %v773
        %v775 = vpop.f32.mrf.mxu0
        %v776 = vadd.f32 %v600, %v775
        %v777 = vpop.f32.mrf.mxu0
        %778 = vmatprep.mubr.f32.mxu0 0.0
        %v779 = vand.u32 %v217, 4294901760
        %v780 = vsub.f32 %v217, %v779
        %781 = vmatmul.mubr.f32.gmra.mxu0 %v780
        %v782 = vpop.f32.mrf.mxu0
        %v783 = vadd.f32 %v606, %v782
        %v784 = vpop.f32.mrf.mxu0
        %785 = vmatprep.mubr.f32.mxu0 0.0
        %v786 = vand.u32 %v220, 4294901760
        %v787 = vsub.f32 %v220, %v786
        %788 = vmatmul.mubr.f32.gmra.mxu0 %v787
        %v789 = vpop.f32.mrf.mxu0
        %v790 = vadd.f32 %v612, %v789
        %v791 = vpop.f32.mrf.mxu0
        %792 = vmatprep.mubr.f32.mxu0 0.0
        %v793 = vand.u32 %v223, 4294901760
        %v794 = vsub.f32 %v223, %v793
        %795 = vmatmul.mubr.f32.gmra.mxu0 %v794
        %v796 = vpop.f32.mrf.mxu0
        %v797 = vadd.f32 %v618, %v796
        %v798 = vpop.f32.mrf.mxu0
        %799 = vmatprep.mubr.f32.mxu0 0.0
        %v800 = vand.u32 %v226, 4294901760
        %v801 = vsub.f32 %v226, %v800
        %802 = vmatmul.mubr.f32.gmra.mxu0 %v801
        %v803 = vpop.f32.mrf.mxu0
        %v804 = vadd.f32 %v624, %v803
        %v805 = vpop.f32.mrf.mxu0
        %806 = vmatprep.mubr.f32.mxu0 0.0
        %v807 = vand.u32 %v229, 4294901760
        %v808 = vsub.f32 %v229, %v807
        %809 = vmatmul.mubr.f32.gmra.mxu0 %v808
        %v810 = vpop.f32.mrf.mxu0
        %v811 = vadd.f32 %v630, %v810
        %v812 = vpop.f32.mrf.mxu0
        %813 = vmatprep.mubr.f32.mxu0 0.0
        %v814 = vand.u32 %v232, 4294901760
        %v815 = vsub.f32 %v232, %v814
        %816 = vmatmul.mubr.f32.gmra.mxu0 %v815
        %v817 = vpop.f32.mrf.mxu0
        %v818 = vadd.f32 %v636, %v817
        %v819 = vpop.f32.mrf.mxu0
        %820 = vmatprep.mubr.f32.mxu0 0.0
        %v821 = vand.u32 %v235, 4294901760
        %v822 = vsub.f32 %v235, %v821
        %823 = vmatmul.mubr.f32.gmra.mxu0 %v822
        %v824 = vpop.f32.mrf.mxu0
        %v825 = vadd.f32 %v642, %v824
        %v826 = vpop.f32.mrf.mxu0
        %827 = vmatprep.mubr.f32.mxu0 0.0
        %v828 = vand.u32 %v238, 4294901760
        %v829 = vsub.f32 %v238, %v828
        %830 = vmatmul.mubr.f32.gmra.mxu0 %v829
        %v831 = vpop.f32.mrf.mxu0
        %v832 = vadd.f32 %v648, %v831
        %v833 = vpop.f32.mrf.mxu0
        %834 = vmatprep.mubr.f32.mxu0 0.0
        %v835 = vand.u32 %v241, 4294901760
        %v836 = vsub.f32 %v241, %v835
        %837 = vmatmul.mubr.f32.gmra.mxu0 %v836
        %v838 = vpop.f32.mrf.mxu0
        %v839 = vadd.f32 %v654, %v838
        %v840 = vpop.f32.mrf.mxu0
        %841 = vmatprep.mubr.f32.mxu0 0.0
        %v842 = vand.u32 %v244, 4294901760
        %v843 = vsub.f32 %v244, %v842
        %844 = vmatmul.mubr.f32.gmra.mxu0 %v843
        %v845 = vpop.f32.mrf.mxu0
        %v846 = vadd.f32 %v660, %v845
        %v847 = vpop.f32.mrf.mxu0
        %848 = vmatprep.mubr.f32.mxu0 0.0
        %v849 = vand.u32 %v247, 4294901760
        %v850 = vsub.f32 %v247, %v849
        %851 = vmatmul.mubr.f32.gmra.mxu0 %v850
        %v852 = vpop.f32.mrf.mxu0
        %v853 = vadd.f32 %v666, %v852
        %v854 = vpop.f32.mrf.mxu0
        %855 = vdwg.mxu0
        %856 = vmatprep.subr.mxu0 0.0
        %857 = vmatpush1.msra.mxu0 0.0
        %858 = vmatprep.subr.mxu0 0.0
        %859 = vmatpush1.msra.mxu0 0.0
        %860 = vmatprep.subr.mxu0 0.0
        %861 = vmatpush1.msra.mxu0 0.0
        %862 = vmatprep.subr.mxu0 0.0
        %863 = vmatpush1.msra.mxu0 0.0
        %864 = vmatprep.subr.mxu0 0.0
        %865 = vmatpush1.msra.mxu0 0.0
        %866 = vmatprep.subr.mxu0 0.0
        %867 = vmatpush1.msra.mxu0 0.0
        %868 = vmatprep.subr.mxu0 0.0
        %869 = vmatpush1.msra.mxu0 0.0
        %870 = vmatprep.subr.mxu0 0.0
        %871 = vmatpush1.msra.mxu0 0.0
        %872 = vmatprep.subr.mxu0 0.0
        %873 = vmatpush1.msra.mxu0 0.0
        %874 = vmatprep.subr.mxu0 0.0
        %875 = vmatpush1.msra.mxu0 0.0
        %876 = vmatprep.subr.mxu0 0.0
        %877 = vmatpush1.msra.mxu0 0.0
        %878 = vmatprep.subr.mxu0 0.0
        %v879 = vand.u32 %v251, 4294901760
        %880 = vmatpush1.msra.mxu0 %v879
        %881 = vmatprep.subr.mxu0 0.0
        %v882 = vand.u32 %v191, 4294901760
        %883 = vmatpush1.msra.mxu0 %v882
        %884 = vmatprep.subr.mxu0 0.0
        %v885 = vand.u32 %v190, 4294901760
        %886 = vmatpush1.msra.mxu0 %v885
        %887 = vmatprep.subr.mxu0 0.0
        %v888 = vand.u32 %v189, 4294901760
        %889 = vmatpush1.msra.mxu0 %v888
        %890 = vmatprep.subr.mxu0 0.0
        %v891 = vand.u32 %v188, 4294901760
        %892 = vmatpush1.msra.mxu0 %v891
        %893 = vmatprep.subr.mxu0 0.0
        %894 = vmatpush2.msra.mxu0 0.0
        %895 = vmatprep.subr.mxu0 0.0
        %896 = vmatpush2.msra.mxu0 0.0
        %897 = vmatprep.subr.mxu0 0.0
        %898 = vmatpush2.msra.mxu0 0.0
        %899 = vmatprep.subr.mxu0 0.0
        %900 = vmatpush2.msra.mxu0 0.0
        %901 = vmatprep.subr.mxu0 0.0
        %902 = vmatpush2.msra.mxu0 0.0
        %903 = vmatprep.subr.mxu0 0.0
        %904 = vmatpush2.msra.mxu0 0.0
        %905 = vmatprep.subr.mxu0 0.0
        %906 = vmatpush2.msra.mxu0 0.0
        %907 = vmatprep.subr.mxu0 0.0
        %908 = vmatpush2.msra.mxu0 0.0
        %909 = vmatprep.subr.mxu0 0.0
        %910 = vmatpush2.msra.mxu0 0.0
        %911 = vmatprep.subr.mxu0 0.0
        %912 = vmatpush2.msra.mxu0 0.0
        %913 = vmatprep.subr.mxu0 0.0
        %914 = vmatpush2.msra.mxu0 0.0
        %915 = vmatprep.subr.mxu0 0.0
        %916 = vmatpush2.msra.mxu0 0.0
        %917 = vmatprep.subr.mxu0 0.0
        %918 = vmatpush2.msra.mxu0 0.0
        %919 = vmatprep.subr.mxu0 0.0
        %920 = vmatpush2.msra.mxu0 0.0
        %921 = vmatprep.subr.mxu0 0.0
        %922 = vmatpush2.msra.mxu0 0.0
        %923 = vmatprep.subr.mxu0 0.0
        %924 = vmatpush2.msra.mxu0 0.0
        %925 = vmatprep.mubr.f32.mxu0 0.0
        %v926 = vand.u32 %v202, 4294901760
        %v927 = vsub.f32 %v202, %v926
        %v928 = vand.u32 %v927, 4294901760
        %929 = vmatmul.mubr.f32.gmra.mxu0 %v928
        %v930 = vpop.f32.mrf.mxu0
        %v931 = vadd.f32 %v748, %v930
        %v932 = vpop.f32.mrf.mxu0
        %933 = vmatprep.mubr.f32.mxu0 0.0
        %v934 = vand.u32 %v205, 4294901760
        %v935 = vsub.f32 %v205, %v934
        %v936 = vand.u32 %v935, 4294901760
        %937 = vmatmul.mubr.f32.gmra.mxu0 %v936
        %v938 = vpop.f32.mrf.mxu0
        %v939 = vadd.f32 %v755, %v938
        %v940 = vpop.f32.mrf.mxu0
        %941 = vmatprep.mubr.f32.mxu0 0.0
        %v942 = vand.u32 %v208, 4294901760
        %v943 = vsub.f32 %v208, %v942
        %v944 = vand.u32 %v943, 4294901760
        %945 = vmatmul.mubr.f32.gmra.mxu0 %v944
        %v946 = vpop.f32.mrf.mxu0
        %v947 = vadd.f32 %v762, %v946
        %v948 = vpop.f32.mrf.mxu0
        %949 = vmatprep.mubr.f32.mxu0 0.0
        %v950 = vand.u32 %v211, 4294901760
        %v951 = vsub.f32 %v211, %v950
        %v952 = vand.u32 %v951, 4294901760
        %953 = vmatmul.mubr.f32.gmra.mxu0 %v952
        %v954 = vpop.f32.mrf.mxu0
        %v955 = vadd.f32 %v769, %v954
        %v956 = vpop.f32.mrf.mxu0
        %957 = vmatprep.mubr.f32.mxu0 0.0
        %v958 = vand.u32 %v214, 4294901760
        %v959 = vsub.f32 %v214, %v958
        %v960 = vand.u32 %v959, 4294901760
        %961 = vmatmul.mubr.f32.gmra.mxu0 %v960
        %v962 = vpop.f32.mrf.mxu0
        %v963 = vadd.f32 %v776, %v962
        %v964 = vpop.f32.mrf.mxu0
        %965 = vmatprep.mubr.f32.mxu0 0.0
        %v966 = vand.u32 %v217, 4294901760
        %v967 = vsub.f32 %v217, %v966
        %v968 = vand.u32 %v967, 4294901760
        %969 = vmatmul.mubr.f32.gmra.mxu0 %v968
        %v970 = vpop.f32.mrf.mxu0
        %v971 = vadd.f32 %v783, %v970
        %v972 = vpop.f32.mrf.mxu0
        %973 = vmatprep.mubr.f32.mxu0 0.0
        %v974 = vand.u32 %v220, 4294901760
        %v975 = vsub.f32 %v220, %v974
        %v976 = vand.u32 %v975, 4294901760
        %977 = vmatmul.mubr.f32.gmra.mxu0 %v976
        %v978 = vpop.f32.mrf.mxu0
        %v979 = vadd.f32 %v790, %v978
        %v980 = vpop.f32.mrf.mxu0
        %981 = vmatprep.mubr.f32.mxu0 0.0
        %v982 = vand.u32 %v223, 4294901760
        %v983 = vsub.f32 %v223, %v982
        %v984 = vand.u32 %v983, 4294901760
        %985 = vmatmul.mubr.f32.gmra.mxu0 %v984
        %v986 = vpop.f32.mrf.mxu0
        %v987 = vadd.f32 %v797, %v986
        %v988 = vpop.f32.mrf.mxu0
        %989 = vmatprep.mubr.f32.mxu0 0.0
        %v990 = vand.u32 %v226, 4294901760
        %v991 = vsub.f32 %v226, %v990
        %v992 = vand.u32 %v991, 4294901760
        %993 = vmatmul.mubr.f32.gmra.mxu0 %v992
        %v994 = vpop.f32.mrf.mxu0
        %v995 = vadd.f32 %v804, %v994
        %v996 = vpop.f32.mrf.mxu0
        %997 = vmatprep.mubr.f32.mxu0 0.0
        %v998 = vand.u32 %v229, 4294901760
        %v999 = vsub.f32 %v229, %v998
        %v1000 = vand.u32 %v999, 4294901760
        %1001 = vmatmul.mubr.f32.gmra.mxu0 %v1000
        %v1002 = vpop.f32.mrf.mxu0
        %v1003 = vadd.f32 %v811, %v1002
        %v1004 = vpop.f32.mrf.mxu0
        %1005 = vmatprep.mubr.f32.mxu0 0.0
        %v1006 = vand.u32 %v232, 4294901760
        %v1007 = vsub.f32 %v232, %v1006
        %v1008 = vand.u32 %v1007, 4294901760
        %1009 = vmatmul.mubr.f32.gmra.mxu0 %v1008
        %v1010 = vpop.f32.mrf.mxu0
        %v1011 = vadd.f32 %v818, %v1010
        %v1012 = vpop.f32.mrf.mxu0
        %1013 = vmatprep.mubr.f32.mxu0 0.0
        %v1014 = vand.u32 %v235, 4294901760
        %v1015 = vsub.f32 %v235, %v1014
        %v1016 = vand.u32 %v1015, 4294901760
        %1017 = vmatmul.mubr.f32.gmra.mxu0 %v1016
        %v1018 = vpop.f32.mrf.mxu0
        %v1019 = vadd.f32 %v825, %v1018
        %v1020 = vpop.f32.mrf.mxu0
        %1021 = vmatprep.mubr.f32.mxu0 0.0
        %v1022 = vand.u32 %v238, 4294901760
        %v1023 = vsub.f32 %v238, %v1022
        %v1024 = vand.u32 %v1023, 4294901760
        %1025 = vmatmul.mubr.f32.gmra.mxu0 %v1024
        %v1026 = vpop.f32.mrf.mxu0
        %v1027 = vadd.f32 %v832, %v1026
        %v1028 = vpop.f32.mrf.mxu0
        %1029 = vmatprep.mubr.f32.mxu0 0.0
        %v1030 = vand.u32 %v241, 4294901760
        %v1031 = vsub.f32 %v241, %v1030
        %v1032 = vand.u32 %v1031, 4294901760
        %1033 = vmatmul.mubr.f32.gmra.mxu0 %v1032
        %v1034 = vpop.f32.mrf.mxu0
        %v1035 = vadd.f32 %v839, %v1034
        %v1036 = vpop.f32.mrf.mxu0
        %1037 = vmatprep.mubr.f32.mxu0 0.0
        %v1038 = vand.u32 %v244, 4294901760
        %v1039 = vsub.f32 %v244, %v1038
        %v1040 = vand.u32 %v1039, 4294901760
        %1041 = vmatmul.mubr.f32.gmra.mxu0 %v1040
        %v1042 = vpop.f32.mrf.mxu0
        %v1043 = vadd.f32 %v846, %v1042
        %v1044 = vpop.f32.mrf.mxu0
        %1045 = vmatprep.mubr.f32.mxu0 0.0
        %v1046 = vand.u32 %v247, 4294901760
        %v1047 = vsub.f32 %v247, %v1046
        %v1048 = vand.u32 %v1047, 4294901760
        %1049 = vmatmul.mubr.f32.gmra.mxu0 %v1048
        %v1050 = vpop.f32.mrf.mxu0
        %v1051 = vadd.f32 %v853, %v1050
        %v1052 = vpop.f32.mrf.mxu0
        %1053 = vdwg.mxu0
        %1054 = vmatprep.subr.mxu0 0.0
        %1055 = vmatpush1.msra.mxu0 0.0
        %1056 = vmatprep.subr.mxu0 0.0
        %1057 = vmatpush1.msra.mxu0 0.0
        %1058 = vmatprep.subr.mxu0 0.0
        %1059 = vmatpush1.msra.mxu0 0.0
        %1060 = vmatprep.subr.mxu0 0.0
        %1061 = vmatpush1.msra.mxu0 0.0
        %1062 = vmatprep.subr.mxu0 0.0
        %1063 = vmatpush1.msra.mxu0 0.0
        %1064 = vmatprep.subr.mxu0 0.0
        %1065 = vmatpush1.msra.mxu0 0.0
        %1066 = vmatprep.subr.mxu0 0.0
        %1067 = vmatpush1.msra.mxu0 0.0
        %1068 = vmatprep.subr.mxu0 0.0
        %1069 = vmatpush1.msra.mxu0 0.0
        %1070 = vmatprep.subr.mxu0 0.0
        %1071 = vmatpush1.msra.mxu0 0.0
        %1072 = vmatprep.subr.mxu0 0.0
        %1073 = vmatpush1.msra.mxu0 0.0
        %1074 = vmatprep.subr.mxu0 0.0
        %1075 = vmatpush1.msra.mxu0 0.0
        %1076 = vmatprep.subr.mxu0 0.0
        %v1077 = vand.u32 %v251, 4294901760
        %v1078 = vsub.f32 %v251, %v1077
        %v1079 = vand.u32 %v1078, 4294901760
        %1080 = vmatpush1.msra.mxu0 %v1079
        %1081 = vmatprep.subr.mxu0 0.0
        %v1082 = vand.u32 %v191, 4294901760
        %v1083 = vsub.f32 %v191, %v1082
        %v1084 = vand.u32 %v1083, 4294901760
        %1085 = vmatpush1.msra.mxu0 %v1084
        %1086 = vmatprep.subr.mxu0 0.0
        %v1087 = vand.u32 %v190, 4294901760
        %v1088 = vsub.f32 %v190, %v1087
        %v1089 = vand.u32 %v1088, 4294901760
        %1090 = vmatpush1.msra.mxu0 %v1089
        %1091 = vmatprep.subr.mxu0 0.0
        %v1092 = vand.u32 %v189, 4294901760
        %v1093 = vsub.f32 %v189, %v1092
        %v1094 = vand.u32 %v1093, 4294901760
        %1095 = vmatpush1.msra.mxu0 %v1094
        %1096 = vmatprep.subr.mxu0 0.0
        %v1097 = vand.u32 %v188, 4294901760
        %v1098 = vsub.f32 %v188, %v1097
        %v1099 = vand.u32 %v1098, 4294901760
        %1100 = vmatpush1.msra.mxu0 %v1099
        %1101 = vmatprep.subr.mxu0 0.0
        %1102 = vmatpush2.msra.mxu0 0.0
        %1103 = vmatprep.subr.mxu0 0.0
        %1104 = vmatpush2.msra.mxu0 0.0
        %1105 = vmatprep.subr.mxu0 0.0
        %1106 = vmatpush2.msra.mxu0 0.0
        %1107 = vmatprep.subr.mxu0 0.0
        %1108 = vmatpush2.msra.mxu0 0.0
        %1109 = vmatprep.subr.mxu0 0.0
        %1110 = vmatpush2.msra.mxu0 0.0
        %1111 = vmatprep.subr.mxu0 0.0
        %1112 = vmatpush2.msra.mxu0 0.0
        %1113 = vmatprep.subr.mxu0 0.0
        %1114 = vmatpush2.msra.mxu0 0.0
        %1115 = vmatprep.subr.mxu0 0.0
        %1116 = vmatpush2.msra.mxu0 0.0
        %1117 = vmatprep.subr.mxu0 0.0
        %1118 = vmatpush2.msra.mxu0 0.0
        %1119 = vmatprep.subr.mxu0 0.0
        %1120 = vmatpush2.msra.mxu0 0.0
        %1121 = vmatprep.subr.mxu0 0.0
        %1122 = vmatpush2.msra.mxu0 0.0
        %1123 = vmatprep.subr.mxu0 0.0
        %1124 = vmatpush2.msra.mxu0 0.0
        %1125 = vmatprep.subr.mxu0 0.0
        %1126 = vmatpush2.msra.mxu0 0.0
        %1127 = vmatprep.subr.mxu0 0.0
        %1128 = vmatpush2.msra.mxu0 0.0
        %1129 = vmatprep.subr.mxu0 0.0
        %1130 = vmatpush2.msra.mxu0 0.0
        %1131 = vmatprep.subr.mxu0 0.0
        %1132 = vmatpush2.msra.mxu0 0.0
        %1133 = vmatprep.mubr.f32.mxu0 0.0
        %v1134 = vand.u32 %v202, 4294901760
        %1135 = vmatmul.mubr.f32.gmra.mxu0 %v1134
        %v1136 = vpop.f32.mrf.mxu0
        %v1137 = vadd.f32 %v931, %v1136
        %v1138 = vpop.f32.mrf.mxu0
        %1139 = vmatprep.mubr.f32.mxu0 0.0
        %v1140 = vand.u32 %v205, 4294901760
        %1141 = vmatmul.mubr.f32.gmra.mxu0 %v1140
        %v1142 = vpop.f32.mrf.mxu0
        %v1143 = vadd.f32 %v939, %v1142
        %v1144 = vpop.f32.mrf.mxu0
        %1145 = vmatprep.mubr.f32.mxu0 0.0
        %v1146 = vand.u32 %v208, 4294901760
        %1147 = vmatmul.mubr.f32.gmra.mxu0 %v1146
        %v1148 = vpop.f32.mrf.mxu0
        %v1149 = vadd.f32 %v947, %v1148
        %v1150 = vpop.f32.mrf.mxu0
        %1151 = vmatprep.mubr.f32.mxu0 0.0
        %v1152 = vand.u32 %v211, 4294901760
        %1153 = vmatmul.mubr.f32.gmra.mxu0 %v1152
        %v1154 = vpop.f32.mrf.mxu0
        %v1155 = vadd.f32 %v955, %v1154
        %v1156 = vpop.f32.mrf.mxu0
        %1157 = vmatprep.mubr.f32.mxu0 0.0
        %v1158 = vand.u32 %v214, 4294901760
        %1159 = vmatmul.mubr.f32.gmra.mxu0 %v1158
        %v1160 = vpop.f32.mrf.mxu0
        %v1161 = vadd.f32 %v963, %v1160
        %v1162 = vpop.f32.mrf.mxu0
        %1163 = vmatprep.mubr.f32.mxu0 0.0
        %v1164 = vand.u32 %v217, 4294901760
        %1165 = vmatmul.mubr.f32.gmra.mxu0 %v1164
        %v1166 = vpop.f32.mrf.mxu0
        %v1167 = vadd.f32 %v971, %v1166
        %v1168 = vpop.f32.mrf.mxu0
        %1169 = vmatprep.mubr.f32.mxu0 0.0
        %v1170 = vand.u32 %v220, 4294901760
        %1171 = vmatmul.mubr.f32.gmra.mxu0 %v1170
        %v1172 = vpop.f32.mrf.mxu0
        %v1173 = vadd.f32 %v979, %v1172
        %v1174 = vpop.f32.mrf.mxu0
        %1175 = vmatprep.mubr.f32.mxu0 0.0
        %v1176 = vand.u32 %v223, 4294901760
        %1177 = vmatmul.mubr.f32.gmra.mxu0 %v1176
        %v1178 = vpop.f32.mrf.mxu0
        %v1179 = vadd.f32 %v987, %v1178
        %v1180 = vpop.f32.mrf.mxu0
        %1181 = vmatprep.mubr.f32.mxu0 0.0
        %v1182 = vand.u32 %v226, 4294901760
        %1183 = vmatmul.mubr.f32.gmra.mxu0 %v1182
        %v1184 = vpop.f32.mrf.mxu0
        %v1185 = vadd.f32 %v995, %v1184
        %v1186 = vpop.f32.mrf.mxu0
        %1187 = vmatprep.mubr.f32.mxu0 0.0
        %v1188 = vand.u32 %v229, 4294901760
        %1189 = vmatmul.mubr.f32.gmra.mxu0 %v1188
        %v1190 = vpop.f32.mrf.mxu0
        %v1191 = vadd.f32 %v1003, %v1190
        %v1192 = vpop.f32.mrf.mxu0
        %1193 = vmatprep.mubr.f32.mxu0 0.0
        %v1194 = vand.u32 %v232, 4294901760
        %1195 = vmatmul.mubr.f32.gmra.mxu0 %v1194
        %v1196 = vpop.f32.mrf.mxu0
        %v1197 = vadd.f32 %v1011, %v1196
        %v1198 = vpop.f32.mrf.mxu0
        %1199 = vmatprep.mubr.f32.mxu0 0.0
        %v1200 = vand.u32 %v235, 4294901760
        %1201 = vmatmul.mubr.f32.gmra.mxu0 %v1200
        %v1202 = vpop.f32.mrf.mxu0
        %v1203 = vadd.f32 %v1019, %v1202
        %v1204 = vpop.f32.mrf.mxu0
        %1205 = vmatprep.mubr.f32.mxu0 0.0
        %v1206 = vand.u32 %v238, 4294901760
        %1207 = vmatmul.mubr.f32.gmra.mxu0 %v1206
        %v1208 = vpop.f32.mrf.mxu0
        %v1209 = vadd.f32 %v1027, %v1208
        %v1210 = vpop.f32.mrf.mxu0
        %1211 = vmatprep.mubr.f32.mxu0 0.0
        %v1212 = vand.u32 %v241, 4294901760
        %1213 = vmatmul.mubr.f32.gmra.mxu0 %v1212
        %v1214 = vpop.f32.mrf.mxu0
        %v1215 = vadd.f32 %v1035, %v1214
        %v1216 = vpop.f32.mrf.mxu0
        %1217 = vmatprep.mubr.f32.mxu0 0.0
        %v1218 = vand.u32 %v244, 4294901760
        %1219 = vmatmul.mubr.f32.gmra.mxu0 %v1218
        %v1220 = vpop.f32.mrf.mxu0
        %v1221 = vadd.f32 %v1043, %v1220
        %v1222 = vpop.f32.mrf.mxu0
        %1223 = vmatprep.mubr.f32.mxu0 0.0
        %v1224 = vand.u32 %v247, 4294901760
        %1225 = vmatmul.mubr.f32.gmra.mxu0 %v1224
        %v1226 = vpop.f32.mrf.mxu0
        %v1227 = vadd.f32 %v1051, %v1226
        %v1228 = vpop.f32.mrf.mxu0
        %1229 = vdwg.mxu0
        %1230 = vmatprep.subr.mxu0 0.0
        %1231 = vmatpush1.msra.mxu0 0.0
        %1232 = vmatprep.subr.mxu0 0.0
        %1233 = vmatpush1.msra.mxu0 0.0
        %1234 = vmatprep.subr.mxu0 0.0
        %1235 = vmatpush1.msra.mxu0 0.0
        %1236 = vmatprep.subr.mxu0 0.0
        %1237 = vmatpush1.msra.mxu0 0.0
        %1238 = vmatprep.subr.mxu0 0.0
        %1239 = vmatpush1.msra.mxu0 0.0
        %1240 = vmatprep.subr.mxu0 0.0
        %1241 = vmatpush1.msra.mxu0 0.0
        %1242 = vmatprep.subr.mxu0 0.0
        %1243 = vmatpush1.msra.mxu0 0.0
        %1244 = vmatprep.subr.mxu0 0.0
        %1245 = vmatpush1.msra.mxu0 0.0
        %1246 = vmatprep.subr.mxu0 0.0
        %1247 = vmatpush1.msra.mxu0 0.0
        %1248 = vmatprep.subr.mxu0 0.0
        %1249 = vmatpush1.msra.mxu0 0.0
        %1250 = vmatprep.subr.mxu0 0.0
        %1251 = vmatpush1.msra.mxu0 0.0
        %1252 = vmatprep.subr.mxu0 0.0
        %v1253 = vand.u32 %v251, 4294901760
        %1254 = vmatpush1.msra.mxu0 %v1253
        %1255 = vmatprep.subr.mxu0 0.0
        %v1256 = vand.u32 %v191, 4294901760
        %1257 = vmatpush1.msra.mxu0 %v1256
        %1258 = vmatprep.subr.mxu0 0.0
        %v1259 = vand.u32 %v190, 4294901760
        %1260 = vmatpush1.msra.mxu0 %v1259
        %1261 = vmatprep.subr.mxu0 0.0
        %v1262 = vand.u32 %v189, 4294901760
        %1263 = vmatpush1.msra.mxu0 %v1262
        %1264 = vmatprep.subr.mxu0 0.0
        %v1265 = vand.u32 %v188, 4294901760
        %1266 = vmatpush1.msra.mxu0 %v1265
        %1267 = vmatprep.subr.mxu0 0.0
        %1268 = vmatpush2.msra.mxu0 0.0
        %1269 = vmatprep.subr.mxu0 0.0
        %1270 = vmatpush2.msra.mxu0 0.0
        %1271 = vmatprep.subr.mxu0 0.0
        %1272 = vmatpush2.msra.mxu0 0.0
        %1273 = vmatprep.subr.mxu0 0.0
        %1274 = vmatpush2.msra.mxu0 0.0
        %1275 = vmatprep.subr.mxu0 0.0
        %1276 = vmatpush2.msra.mxu0 0.0
        %1277 = vmatprep.subr.mxu0 0.0
        %1278 = vmatpush2.msra.mxu0 0.0
        %1279 = vmatprep.subr.mxu0 0.0
        %1280 = vmatpush2.msra.mxu0 0.0
        %1281 = vmatprep.subr.mxu0 0.0
        %1282 = vmatpush2.msra.mxu0 0.0
        %1283 = vmatprep.subr.mxu0 0.0
        %1284 = vmatpush2.msra.mxu0 0.0
        %1285 = vmatprep.subr.mxu0 0.0
        %1286 = vmatpush2.msra.mxu0 0.0
        %1287 = vmatprep.subr.mxu0 0.0
        %1288 = vmatpush2.msra.mxu0 0.0
        %1289 = vmatprep.subr.mxu0 0.0
        %1290 = vmatpush2.msra.mxu0 0.0
        %1291 = vmatprep.subr.mxu0 0.0
        %1292 = vmatpush2.msra.mxu0 0.0
        %1293 = vmatprep.subr.mxu0 0.0
        %1294 = vmatpush2.msra.mxu0 0.0
        %1295 = vmatprep.subr.mxu0 0.0
        %1296 = vmatpush2.msra.mxu0 0.0
        %1297 = vmatprep.subr.mxu0 0.0
        %1298 = vmatpush2.msra.mxu0 0.0
        %1299 = vmatprep.mubr.f32.mxu0 0.0
        %v1300 = vand.u32 %v202, 4294901760
        %1301 = vmatmul.mubr.f32.gmra.mxu0 %v1300
        %v1302 = vpop.f32.mrf.mxu0
        %v1303 = vadd.f32 %v1137, %v1302
        %v1304 = vpop.f32.mrf.mxu0
        %1305 = vmatprep.mubr.f32.mxu0 0.0
        %v1306 = vand.u32 %v205, 4294901760
        %1307 = vmatmul.mubr.f32.gmra.mxu0 %v1306
        %v1308 = vpop.f32.mrf.mxu0
        %v1309 = vadd.f32 %v1143, %v1308
        %v1310 = vpop.f32.mrf.mxu0
        %1311 = vmatprep.mubr.f32.mxu0 0.0
        %v1312 = vand.u32 %v208, 4294901760
        %1313 = vmatmul.mubr.f32.gmra.mxu0 %v1312
        %v1314 = vpop.f32.mrf.mxu0
        %v1315 = vadd.f32 %v1149, %v1314
        %v1316 = vpop.f32.mrf.mxu0
        %1317 = vmatprep.mubr.f32.mxu0 0.0
        %v1318 = vand.u32 %v211, 4294901760
        %1319 = vmatmul.mubr.f32.gmra.mxu0 %v1318
        %v1320 = vpop.f32.mrf.mxu0
        %v1321 = vadd.f32 %v1155, %v1320
        %v1322 = vpop.f32.mrf.mxu0
        %1323 = vmatprep.mubr.f32.mxu0 0.0
        %v1324 = vand.u32 %v214, 4294901760
        %1325 = vmatmul.mubr.f32.gmra.mxu0 %v1324
        %v1326 = vpop.f32.mrf.mxu0
        %v1327 = vadd.f32 %v1161, %v1326
        %v1328 = vpop.f32.mrf.mxu0
        %1329 = vmatprep.mubr.f32.mxu0 0.0
        %v1330 = vand.u32 %v217, 4294901760
        %1331 = vmatmul.mubr.f32.gmra.mxu0 %v1330
        %v1332 = vpop.f32.mrf.mxu0
        %v1333 = vadd.f32 %v1167, %v1332
        %v1334 = vpop.f32.mrf.mxu0
        %1335 = vmatprep.mubr.f32.mxu0 0.0
        %v1336 = vand.u32 %v220, 4294901760
        %1337 = vmatmul.mubr.f32.gmra.mxu0 %v1336
        %v1338 = vpop.f32.mrf.mxu0
        %v1339 = vadd.f32 %v1173, %v1338
        %v1340 = vpop.f32.mrf.mxu0
        %1341 = vmatprep.mubr.f32.mxu0 0.0
        %v1342 = vand.u32 %v223, 4294901760
        %1343 = vmatmul.mubr.f32.gmra.mxu0 %v1342
        %v1344 = vpop.f32.mrf.mxu0
        %v1345 = vadd.f32 %v1179, %v1344
        %v1346 = vpop.f32.mrf.mxu0
        %1347 = vmatprep.mubr.f32.mxu0 0.0
        %v1348 = vand.u32 %v226, 4294901760
        %1349 = vmatmul.mubr.f32.gmra.mxu0 %v1348
        %v1350 = vpop.f32.mrf.mxu0
        %v1351 = vadd.f32 %v1185, %v1350
        %v1352 = vpop.f32.mrf.mxu0
        %1353 = vmatprep.mubr.f32.mxu0 0.0
        %v1354 = vand.u32 %v229, 4294901760
        %1355 = vmatmul.mubr.f32.gmra.mxu0 %v1354
        %v1356 = vpop.f32.mrf.mxu0
        %v1357 = vadd.f32 %v1191, %v1356
        %v1358 = vpop.f32.mrf.mxu0
        %1359 = vmatprep.mubr.f32.mxu0 0.0
        %v1360 = vand.u32 %v232, 4294901760
        %1361 = vmatmul.mubr.f32.gmra.mxu0 %v1360
        %v1362 = vpop.f32.mrf.mxu0
        %v1363 = vadd.f32 %v1197, %v1362
        %v1364 = vpop.f32.mrf.mxu0
        %1365 = vmatprep.mubr.f32.mxu0 0.0
        %v1366 = vand.u32 %v235, 4294901760
        %1367 = vmatmul.mubr.f32.gmra.mxu0 %v1366
        %v1368 = vpop.f32.mrf.mxu0
        %v1369 = vadd.f32 %v1203, %v1368
        %v1370 = vpop.f32.mrf.mxu0
        %1371 = vmatprep.mubr.f32.mxu0 0.0
        %v1372 = vand.u32 %v238, 4294901760
        %1373 = vmatmul.mubr.f32.gmra.mxu0 %v1372
        %v1374 = vpop.f32.mrf.mxu0
        %v1375 = vadd.f32 %v1209, %v1374
        %v1376 = vpop.f32.mrf.mxu0
        %1377 = vmatprep.mubr.f32.mxu0 0.0
        %v1378 = vand.u32 %v241, 4294901760
        %1379 = vmatmul.mubr.f32.gmra.mxu0 %v1378
        %v1380 = vpop.f32.mrf.mxu0
        %v1381 = vadd.f32 %v1215, %v1380
        %v1382 = vpop.f32.mrf.mxu0
        %1383 = vmatprep.mubr.f32.mxu0 0.0
        %v1384 = vand.u32 %v244, 4294901760
        %1385 = vmatmul.mubr.f32.gmra.mxu0 %v1384
        %v1386 = vpop.f32.mrf.mxu0
        %v1387 = vadd.f32 %v1221, %v1386
        %v1388 = vpop.f32.mrf.mxu0
        %1389 = vmatprep.mubr.f32.mxu0 0.0
        %v1390 = vand.u32 %v247, 4294901760
        %1391 = vmatmul.mubr.f32.gmra.mxu0 %v1390
        %v1392 = vpop.f32.mrf.mxu0
        %v1393 = vadd.f32 %v1227, %v1392
        %v1394 = vpop.f32.mrf.mxu0
        %1395 = vdwg.mxu0
        %1396 = vst [vmem:[%s164] sm:$0xff] %v1303
        %1397 = vst [vmem:[%s164 + $0x8] sm:$0xff] %v1309
        %1398 = vst [vmem:[%s164 + $0x10] sm:$0xff] %v1315
        %1399 = vst [vmem:[%s164 + $0x18] sm:$0xff] %v1321
        %1400 = vst [vmem:[%s164 + $0x20] sm:$0xff] %v1327
        %1401 = vst [vmem:[%s164 + $0x28] sm:$0xff] %v1333
        %1402 = vst [vmem:[%s164 + $0x30] sm:$0xff] %v1339
        %1403 = vst [vmem:[%s164 + $0x38] sm:$0xff] %v1345
        %1404 = vst [vmem:[%s164 + $0x40] sm:$0xff] %v1351
        %1405 = vst [vmem:[%s164 + $0x48] sm:$0xff] %v1357
        %1406 = vst [vmem:[%s164 + $0x50] sm:$0xff] %v1363
        %1407 = vst [vmem:[%s164 + $0x58] sm:$0xff] %v1369
        %1408 = vst [vmem:[%s164 + $0x60] sm:$0xff] %v1375
        %1409 = vst [vmem:[%s164 + $0x68] sm:$0xff] %v1381
        %1410 = vst [vmem:[%s164 + $0x70] sm:$0xff] %v1387
        %1411 = vst [vmem:[%s164 + $0x78] sm:$0xff] %v1393
        %s1412 = sand.u32 %s93, 1
        %s1413 = scalar_lea.sflag [#allocation3], %s1412
        %s1414 = sand.u32 %s93, 1
        %s1415 = smul.addr %s1414, 128
        %s1416 = scalar_lea.vmem [#allocation2], %s1415
        // Predicated region
        $region33: #{tpu_custom_call.1} parent=31 // pred_check
          %p1417 = pneg %p103
        $region34: #{tpu_custom_call.1} parent=31 // pred_check_branch
          %1419 = sbr.rel (%p1417) target = $region36
        $region35: #{tpu_custom_call.1} parent=31 // pred_region
          %s1420 = smul.u32 16, %s17
          %s1422 = ssub.s32 2048, 2048
          %1423 = vsyncadd %s1413, %s1422
          %s1424 = smul.addr %s1420, 128
          %s1425 = scalar_lea.hbm %s3, %s1424
          %s1426 = sshll.u32 %s1416, 4
          %s1427 = int_to_ptr.vmem [resolvable:$true] %s1426
          %1432 = dma.vmem_to_hbm [thread:$0]  %s1427, 2048, %s1425, %s1413, 128, 128, 8
        $region36: #{tpu_custom_call.1} parent=31 // pred_fallthru
          _
      $region32: #{tpu_custom_call.1} parent=5 // pred_fallthru
        _
      %p1433 = scmp.le.s32.totalorder 2, %s12
      // Predicated region
      $region37: #{tpu_custom_call.1} parent=5 // pred_check
        %p1434 = pneg %p1433
      $region38: #{tpu_custom_call.1} parent=5 // pred_check_branch
        %1436 = sbr.rel (%p1434) target = $region40
      $region39: #{tpu_custom_call.1} parent=5 // pred_region
        %s1437 = ssub.s32 %s12, 2
        // Predicated region
        $region41: #{tpu_custom_call.1} parent=39 // pred_check
          %p1438 = pneg %p109
        $region42: #{tpu_custom_call.1} parent=39 // pred_check_branch
          %1440 = sbr.rel (%p1438) target = $region44
        $region43: #{tpu_custom_call.1} parent=39 // pred_region
          %s1441 = sand.u32 %s94, 1
          %s1442 = scalar_lea.sflag [#allocation3], %s1441
          %s1443 = sand.u32 %s94, 1
          %s1444 = smul.addr %s1443, 128
          %s1445 = scalar_lea.vmem [#allocation2], %s1444
          %1446 = dma.done %s1442, 2048
        $region44: #{tpu_custom_call.1} parent=39 // pred_fallthru
          _
      $region40: #{tpu_custom_call.1} parent=5 // pred_fallthru
        _
    $region6: #{tpu_custom_call.1} parent=1 // loop_footer
      %s16 = sadd.s32 1, %s12
    $region7: #{tpu_custom_call.1} parent=1 // loop_footer_branch
      %11 = sbr.rel target = $region3
    $region8: #{tpu_custom_call.1} parent=1 // loop_exit
      _
    %1447 = vsyncpa [#allocation3], 1
    %s1448 = scalar_lea.sflag [#allocation3], 1
    %1449 = vsyncpa %s1448, 1

</llo_original>
